<compile_context>
chip_gen: v7x
topology: tpu7x:2x2x1
jax: 0.10.0
libtpu: 0.0.40
codegen_flags: <defaults>
</compile_context>

<pallas_src>
import functools

import jax
import jax.numpy as jnp
from jax import lax
from jax.experimental import pallas as pl
from jax.experimental.pallas import tpu as pltpu


# ---------------------------- in-kernel helpers ------------------------------
def _nll_partial(pred_ref, tgt_ref, inv_b):
    """Partial sum of ( -pred[i, target[i]] ) / B over this batch tile."""
    pred = pred_ref[...]                                     # (bb, C) native dtype
    tgt = tgt_ref[...]                                       # (bb, 1) int32
    bb, C = pred.shape
    col = lax.broadcasted_iota(jnp.int32, (bb, C), 1)        # class index per lane
    picked = jnp.where(col == tgt, pred, jnp.zeros_like(pred))
    # f32 accumulation without an explicit full-tile f32 copy.
    return -jnp.sum(picked, dtype=jnp.float32) * jnp.float32(inv_b)


def _reg_partial(trans_ref, inv_b):
    """Partial sum of || A_b A_b^T - I ||_F / B over this batch tile."""
    t = trans_ref[...]                                       # (bb, K, K) native dtype
    bb, K, _ = t.shape
    # Native-dtype operands straight into the MXU; f32 accumulation.
    gram = jnp.einsum("bik,bjk->bij", t, t,
                      preferred_element_type=jnp.float32)    # (bb, K, K) f32
    ri = lax.broadcasted_iota(jnp.int32, (K, K), 0)
    ci = lax.broadcasted_iota(jnp.int32, (K, K), 1)
    eye = (ri == ci).astype(jnp.float32)
    diff = gram - eye[None, :, :]                            # stays f32 near identity
    frob_sq = jnp.sum(jnp.sum(diff * diff, axis=2), axis=1, keepdims=True)  # (bb, 1)
    return jnp.sum(jnp.sqrt(frob_sq)) * jnp.float32(inv_b)


# --------------------------------- kernels ------------------------------------
def _nll_kernel(pred_ref, tgt_ref, out_ref, acc_ref, *, inv_b):
    @pl.when(pl.program_id(0) == 0)
    def _init():
        acc_ref[0] = jnp.float32(0.0)

    acc_ref[0] += _nll_partial(pred_ref, tgt_ref, inv_b)

    @pl.when(pl.program_id(0) == pl.num_programs(0) - 1)
    def _finalize():
        out_ref[0] = acc_ref[0]


def _fused_loss_kernel(pred_ref, tgt_ref, trans_ref, out_ref, acc_ref,
                       *, inv_b, scale):
    @pl.when(pl.program_id(0) == 0)
    def _init():
        acc_ref[0] = jnp.float32(0.0)

    part = (_nll_partial(pred_ref, tgt_ref, inv_b)
            + jnp.float32(scale) * _reg_partial(trans_ref, inv_b))
    acc_ref[0] += part

    @pl.when(pl.program_id(0) == pl.num_programs(0) - 1)
    def _finalize():
        out_ref[0] = acc_ref[0]


_SCALAR_OUT_SHAPE = jax.ShapeDtypeStruct((1,), jnp.float32)
_SMEM_OUT_SPEC = pl.BlockSpec(memory_space=pltpu.MemorySpace.SMEM)


def _pick_batch_tile(B, max_tile=128):
    """Largest batch tile <= max_tile that divides B; keeps sublane dim a
    multiple of 8 when tiling (whole-B single block is always legal)."""
    if B <= max_tile:
        return B
    bb = (max_tile // 8) * 8
    while bb >= 8:
        if B % bb == 0:
            return bb
        bb -= 8
    return B


# -------------------------------- wrappers ------------------------------------
def nll_loss(pred, target, *, batch_tile=None):
    B, C = pred.shape
    tgt2d = target.astype(jnp.int32).reshape(B, 1)
    bb = _pick_batch_tile(B) if batch_tile is None else int(batch_tile)
    assert B % bb == 0 and (bb == B or bb % 8 == 0), (B, bb)
    nb = B // bb

    kernel = functools.partial(_nll_kernel, inv_b=1.0 / B)
    cost = pl.CostEstimate(
        flops=int(3 * B * C),
        transcendentals=0,
        bytes_accessed=int(pred.size * pred.dtype.itemsize + tgt2d.size * 4 + 4))

    out = pl.pallas_call(
        kernel,
        out_shape=_SCALAR_OUT_SHAPE,
        grid=(nb,),
        in_specs=[
            pl.BlockSpec((bb, C), lambda i: (i, 0)),
            pl.BlockSpec((bb, 1), lambda i: (i, 0)),
        ],
        out_specs=_SMEM_OUT_SPEC,
        scratch_shapes=[pltpu.SMEM((1,), jnp.float32)],
        compiler_params=pltpu.CompilerParams(
            # Batch axis carries the scalar accumulator -> must be "arbitrary".
            dimension_semantics=("arbitrary",)),
        cost_estimate=cost,
    )(pred, tgt2d)
    return out[0]


def nll_plus_feature_reg(pred, target, trans, mat_diff_loss_scale, *,
                         batch_tile=None):
    B, C = pred.shape
    Bt, K, K2 = trans.shape
    assert K == K2 and Bt == B, (pred.shape, trans.shape)
    tgt2d = target.astype(jnp.int32).reshape(B, 1)
    bb = _pick_batch_tile(B) if batch_tile is None else int(batch_tile)
    assert B % bb == 0 and (bb == B or bb % 8 == 0), (B, bb)
    nb = B // bb

    kernel = functools.partial(_fused_loss_kernel, inv_b=1.0 / B,
                               scale=float(mat_diff_loss_scale))
    cost = pl.CostEstimate(
        flops=int(2 * B * K * K * K + 4 * B * K * K + 3 * B * C),
        transcendentals=int(B),                    # per-sample sqrt
        bytes_accessed=int(pred.size * pred.dtype.itemsize
                           + tgt2d.size * 4
                           + trans.size * trans.dtype.itemsize + 4))

    out = pl.pallas_call(
        kernel,
        out_shape=_SCALAR_OUT_SHAPE,
        grid=(nb,),
        in_specs=[
            pl.BlockSpec((bb, C), lambda i: (i, 0)),
            pl.BlockSpec((bb, 1), lambda i: (i, 0)),
            pl.BlockSpec((bb, K, K), lambda i: (i, 0, 0)),
        ],
        out_specs=_SMEM_OUT_SPEC,
        scratch_shapes=[pltpu.SMEM((1,), jnp.float32)],
        compiler_params=pltpu.CompilerParams(
            dimension_semantics=("arbitrary",)),
        cost_estimate=cost,
    )(pred, tgt2d, trans)
    return out[0]


# ------------------------------ module wrapper ---------------------------------
class GetLoss:
    """JAX/Pallas equivalent of PMSN_cls.get_loss (no learnable parameters)."""

    def __init__(self, mat_diff_loss_scale=0.001, trans_feat=False,
                 batch_tile=None):
        self.mat_diff_loss_scale = mat_diff_loss_scale
        self.trans_feat = trans_feat
        self.batch_tile = batch_tile

    def __call__(self, pred, target, trans_feat):
        if self.trans_feat:
            # Single fused kernel: NLL + regularizer + scaled add.
            return nll_plus_feature_reg(pred, target, trans_feat,
                                        self.mat_diff_loss_scale,
                                        batch_tile=self.batch_tile)
        return nll_loss(pred, target, batch_tile=self.batch_tile)


# ----------------------------------- main ---------------------------------------
if __name__ == "__main__":
    key = jax.random.PRNGKey(0)
    k1, k2, k3 = jax.random.split(key, 3)

    # Realistic-shape-but-small PointNet classification loss:
    #   pred: (B, 40) log-probs, target: (B,), trans_feat: (B, 64, 64)
    B, C, K = 16, 40, 64
    logits = jax.random.normal(k1, (B, C), dtype=jnp.float32)
    pred = jax.nn.log_softmax(logits, axis=-1)
    target = jax.random.randint(k2, (B,), 0, C, dtype=jnp.int32)
    trans = 0.05 * jax.random.normal(k3, (B, K, K), dtype=jnp.float32)

    # batch_tile=8 -> grid=(2,) so the gridded SMEM-accumulator path is exercised.
    # Default (trans_feat=False): plain NLL.
    loss_fn = GetLoss(mat_diff_loss_scale=0.001, trans_feat=False, batch_tile=8)
    loss = jax.block_until_ready(loss_fn(pred, target, trans))

    ref_nll = -jnp.mean(pred[jnp.arange(B), target])
    assert jnp.allclose(loss, ref_nll, atol=1e-5, rtol=1e-5), (loss, ref_nll)

    # trans_feat=True branch: single fused kernel (NLL + scaled regularizer).
    loss_fn_tf = GetLoss(mat_diff_loss_scale=0.001, trans_feat=True, batch_tile=8)
    total = jax.block_until_ready(loss_fn_tf(pred, target, trans))

    gram = jnp.einsum("bij,bkj->bik", trans, trans,
                      precision=jax.lax.Precision.HIGHEST)
    ref_reg = jnp.mean(jnp.sqrt(jnp.sum((gram - jnp.eye(K)[None]) ** 2,
                                        axis=(1, 2))))
    ref_total = ref_nll + 0.001 * ref_reg
    assert jnp.allclose(total, ref_total, atol=1e-4, rtol=1e-4), (total, ref_total)

    print("KERNEL_OK")
</pallas_src>

<mosaic_0001>
module attributes {stable_mosaic.version = 11 : i64} {
  func.func @_nll_kernel(%arg0: i32, %arg1: memref<8x40xf32, #tpu.memory_space<vmem>>, %arg2: memref<8x1xi32, #tpu.memory_space<vmem>>, %arg3: memref<1xf32, #tpu.memory_space<smem>>, %arg4: memref<1xf32, #tpu.memory_space<smem>>) attributes {dimension_semantics = [#tpu.dimension_semantics<arbitrary>], iteration_bounds = array<i64: 2>, scalar_prefetch = 0 : i64, scratch_operands = 1 : i64, tpu.core_type = #tpu.core_type<tc>, window_params = [{transform_indices = @transform_0, window_bounds = array<i64: 8, 40>}, {transform_indices = @transform_1, window_bounds = array<i64: 8, 1>}, {transform_indices = @transform_2, window_bounds = array<i64: 1>}]} {
    %c0_i32 = arith.constant 0 : i32
    %0 = arith.cmpi eq, %arg0, %c0_i32 : i32
    %1 = arith.extui %0 : i1 to i32
    %c0_i32_0 = arith.constant 0 : i32
    %2 = arith.cmpi ne, %1, %c0_i32_0 : i32
    scf.if %2 {
      %cst_10 = arith.constant 0.000000e+00 : f32
      %c0_11 = arith.constant 0 : index
      %22 = memref.load %arg4[%c0_11] : memref<1xf32, #tpu.memory_space<smem>>
      memref.store %cst_10, %arg4[%c0_11] : memref<1xf32, #tpu.memory_space<smem>>
    } else {
    }
    %c0 = arith.constant 0 : index
    %3 = memref.load %arg4[%c0] : memref<1xf32, #tpu.memory_space<smem>>
    %c0_1 = arith.constant 0 : index
    %c0_2 = arith.constant 0 : index
    %4 = vector.load %arg1[%c0_1, %c0_2] : memref<8x40xf32, #tpu.memory_space<vmem>>, vector<8x40xf32>
    %c0_3 = arith.constant 0 : index
    %c0_4 = arith.constant 0 : index
    %5 = vector.load %arg2[%c0_3, %c0_4] : memref<8x1xi32, #tpu.memory_space<vmem>>, vector<8x1xi32>
    %6 = tpu.iota {dimensions = array<i32: 1>} : vector<8x40xi32>
    %7 = vector.broadcast %5 : vector<8x1xi32> to vector<8x40xi32>
    %8 = arith.cmpi eq, %6, %7 : vector<8x40xi32>
    %cst = arith.constant 0.000000e+00 : f32
    %9 = vector.broadcast %cst : f32 to vector<8x40xf32>
    %10 = arith.select %8, %4, %9 : vector<8x40xi1>, vector<8x40xf32>
    %11 = vector.shape_cast %10 : vector<8x40xf32> to vector<1x8x40xf32>
    %cst_5 = arith.constant dense<0.000000e+00> : vector<1xf32>
    %12 = vector.multi_reduction <add>, %11, %cst_5 [1, 2] : vector<1x8x40xf32> to vector<1xf32>
    %13 = vector.shape_cast %12 : vector<1xf32> to vector<1x1x1xf32>
    %14 = vector.extract %13[0, 0, 0] : f32 from vector<1x1x1xf32>
    %cst_6 = arith.constant 0.000000e+00 : f32
    %15 = arith.subf %cst_6, %14 : f32
    %cst_7 = arith.constant 6.250000e-02 : f32
    %16 = arith.mulf %15, %cst_7 : f32
    %17 = arith.addf %3, %16 : f32
    %c0_8 = arith.constant 0 : index
    %18 = memref.load %arg4[%c0_8] : memref<1xf32, #tpu.memory_space<smem>>
    memref.store %17, %arg4[%c0_8] : memref<1xf32, #tpu.memory_space<smem>>
    %c1_i32 = arith.constant 1 : i32
    %19 = arith.cmpi eq, %arg0, %c1_i32 : i32
    %20 = arith.extui %19 : i1 to i32
    %c0_i32_9 = arith.constant 0 : i32
    %21 = arith.cmpi ne, %20, %c0_i32_9 : i32
    scf.if %21 {
      %c0_10 = arith.constant 0 : index
      %22 = memref.load %arg4[%c0_10] : memref<1xf32, #tpu.memory_space<smem>>
      %c0_11 = arith.constant 0 : index
      %23 = memref.load %arg3[%c0_11] : memref<1xf32, #tpu.memory_space<smem>>
      memref.store %22, %arg3[%c0_11] : memref<1xf32, #tpu.memory_space<smem>>
    } else {
    }
    return
  }
  func.func @transform_0(%arg0: i32) -> (i32, i32) {
    %c0_i32 = arith.constant 0 : i32
    %c0_i32_0 = arith.constant 0 : i32
    return %arg0, %c0_i32 : i32, i32
  }
  func.func @transform_1(%arg0: i32) -> (i32, i32) {
    %c0_i32 = arith.constant 0 : i32
    %c0_i32_0 = arith.constant 0 : i32
    return %arg0, %c0_i32 : i32, i32
  }
  func.func @transform_2(%arg0: i32) -> i32 {
    %c0_i32 = arith.constant 0 : i32
    %c0_i32_0 = arith.constant 0 : i32
    return %c0_i32 : i32
  }
}

</mosaic_0001>

<llo_original>
// kernel: tpu_custom_call.1
$region0: #{tpu_custom_call.1}
  #allocation0 [shape = 'u32[]', space=smem, size = 0x4, offset = 0x4, fixed_abs, tag = 'smem constant byte address 0x4 - core index']
  #allocation1 [shape = 'u32[144,128]{1,0:T(1,128)}', space=vmem, size = 0x12000, scoped, tag = 'internal scratch']
  #allocation2 [shape = 'f32[1]{0:T(128)}', space=smem, size = 0x200, scoped, tag = 'scratch operand']
  %s0 = inlined_call_operand.vmem [shape: f32[16,40], index: 0, kind: input, shape index: {}]
  %s1 = inlined_call_operand.vmem [shape: s32[16,1], index: 1, kind: input, shape index: {}]
  %s2 = inlined_call_operand.hbm [shape: f32[1], index: 2, kind: output, shape index: {}]
  %s3 = sld [smem:[#allocation0]]
  $region49: #{tpu_custom_call.1} parent=0
    _
  %s5 = ssub.s32 1, %s3
  %s6 = scalar_select 0, %s5, %s3
  $region1: #{tpu_custom_call.1} parent=0
    #allocation3 [shape = 'u8[512]{0}', space=smem, size = 0x200, scoped, tag = 'output window, operand 0, single buffered']
    #allocation4 [shape = 's32[2]{0}', space=sflag, size = 0x8, scoped, tag = 'scoped memory for tpu_custom_call.1']
    %7 = vsyncpa [#allocation4], 0
    loop: start=0, step=1, limit=4
    $region2: #{tpu_custom_call.1} parent=1 // loop_pre_header
      _
    $region3: #{tpu_custom_call.1} parent=1 // loop_header
      %s9 = sphi 0, %s13
      %p10 = scmp.ge.s32.totalorder %s9, 4
      %s19 = sphi 0, %s21
      %s22 = sphi 0, %s19
      %s23 = sphi 0, %s22
      %s39 = sphi 0, %s23
      %s45 = sphi 0, %s47
      %s48 = sphi 0, %s45
      %s49 = sphi 0, %s48
      %s65 = sphi 0, %s49
      %s69 = sphi 0, %s69
      %s71 = sphi 0, %s69
      %s72 = sphi 0, %s71
      %s86 = sphi 0, %s72
    $region4: #{tpu_custom_call.1} parent=1 // loop_header_branch
      %12 = sbr.rel (%p10) target = $region8
    $region5: #{tpu_custom_call.1} parent=1 // loop_body
      %s14 = ssub.s32 %s9, 1
      %s15 = ssub.s32 %s9, 2
      %s16 = sadd.s32 %s9, 1
      %s17 = ssub.s32 %s9, %s16
      %p18 = scmp.eq.s32.totalorder %s17, 0
      %s20 = sadd.s32 %s19, 1
      %s21 = scalar_select %p18, %s19, %s20
      %p24 = pneg %p18
      %p25 = scmp.eq.s32.totalorder %s9, 1
      %p26 = por %p24, %p25
      %p27 = scmp.ne.s32.totalorder %s19, %s22
      %p28 = scmp.eq.s32.totalorder %s9, 0
      %p29 = por %p27, %p28
      %p30 = scmp.ne.s32.totalorder %s19, %s22
      %p31 = scmp.eq.s32.totalorder %s14, 1
      %p32 = por %p30, %p31
      %p33 = scmp.ne.s32.totalorder %s22, %s23
      %p34 = scmp.eq.s32.totalorder %s14, 0
      %p35 = por %p33, %p34
      %p36 = scmp.ne.s32.totalorder %s22, %s23
      %p37 = scmp.eq.s32.totalorder %s15, 1
      %p38 = por %p36, %p37
      %p40 = scmp.ne.s32.totalorder %s23, %s39
      %p41 = scmp.eq.s32.totalorder %s15, 0
      %p42 = por %p40, %p41
      %s43 = ssub.s32 %s9, %s16
      %p44 = scmp.eq.s32.totalorder %s43, 0
      %s46 = sadd.s32 %s45, 1
      %s47 = scalar_select %p44, %s45, %s46
      %p50 = pneg %p44
      %p51 = scmp.eq.s32.totalorder %s9, 1
      %p52 = por %p50, %p51
      %p53 = scmp.ne.s32.totalorder %s45, %s48
      %p54 = scmp.eq.s32.totalorder %s9, 0
      %p55 = por %p53, %p54
      %p56 = scmp.ne.s32.totalorder %s45, %s48
      %p57 = scmp.eq.s32.totalorder %s14, 1
      %p58 = por %p56, %p57
      %p59 = scmp.ne.s32.totalorder %s48, %s49
      %p60 = scmp.eq.s32.totalorder %s14, 0
      %p61 = por %p59, %p60
      %p62 = scmp.ne.s32.totalorder %s48, %s49
      %p63 = scmp.eq.s32.totalorder %s15, 1
      %p64 = por %p62, %p63
      %p66 = scmp.ne.s32.totalorder %s49, %s65
      %p67 = scmp.eq.s32.totalorder %s15, 0
      %p68 = por %p66, %p67
      %s70 = sadd.s32 %s69, 1
      %p73 = scmp.eq.s32.totalorder %s9, 1
      %p74 = scmp.ne.s32.totalorder %s69, %s71
      %p75 = scmp.eq.s32.totalorder %s9, 0
      %p76 = por %p74, %p75
      %p77 = scmp.ne.s32.totalorder %s69, %s71
      %p78 = scmp.eq.s32.totalorder %s14, 1
      %p79 = por %p77, %p78
      %p80 = scmp.ne.s32.totalorder %s71, %s72
      %p81 = scmp.eq.s32.totalorder %s14, 0
      %p82 = por %p80, %p81
      %p83 = scmp.ne.s32.totalorder %s71, %s72
      %p84 = scmp.eq.s32.totalorder %s15, 1
      %p85 = por %p83, %p84
      %p87 = scmp.ne.s32.totalorder %s72, %s86
      %p88 = scmp.eq.s32.totalorder %s15, 0
      %p89 = por %p87, %p88
      %p90 = scmp.le.s32.totalorder 1, %s9
      %p91 = scmp.lt.s32.totalorder %s9, 3
      %p92 = pnand %p90, %p91
      %p93 = pneg %p92
      // Predicated region
      $region9: #{tpu_custom_call.1} parent=5 // pred_check
        _
      $region10: #{tpu_custom_call.1} parent=5 // pred_check_branch
        %95 = sbr.rel (%p92) target = $region12
      $region11: #{tpu_custom_call.1} parent=5 // pred_region
        %s96 = ssub.s32 %s9, 1
      $region12: #{tpu_custom_call.1} parent=5 // pred_fallthru
        _
      %p97 = scmp.lt.s32.totalorder %s9, 2
      // Predicated region
      $region13: #{tpu_custom_call.1} parent=5 // pred_check
        %p98 = pneg %p97
      $region14: #{tpu_custom_call.1} parent=5 // pred_check_branch
        %100 = sbr.rel (%p98) target = $region16
      $region15: #{tpu_custom_call.1} parent=5 // pred_region
        // Predicated region
        $region17: #{tpu_custom_call.1} parent=15 // pred_check
          %p101 = pneg %p29
        $region18: #{tpu_custom_call.1} parent=15 // pred_check_branch
          %103 = sbr.rel (%p101) target = $region20
        $region19: #{tpu_custom_call.1} parent=15 // pred_region
          %p104 = scmp.lt.s32.totalorder %s9, 1
          %s105 = scalar_select %p104, %s9, 1
          %s106 = smul.addr %s105, 8
          %s107 = scalar_lea.vmem %s0, %s106
        $region20: #{tpu_custom_call.1} parent=15 // pred_fallthru
          _
        // Predicated region
        $region21: #{tpu_custom_call.1} parent=15 // pred_check
          %p108 = pneg %p55
        $region22: #{tpu_custom_call.1} parent=15 // pred_check_branch
          %110 = sbr.rel (%p108) target = $region24
        $region23: #{tpu_custom_call.1} parent=15 // pred_region
          %p111 = scmp.lt.s32.totalorder %s9, 1
          %s112 = scalar_select %p111, %s9, 1
          %s113 = smul.addr %s112, 8
          %s114 = scalar_lea.vmem %s1, %s113
        $region24: #{tpu_custom_call.1} parent=15 // pred_fallthru
          _
      $region16: #{tpu_custom_call.1} parent=5 // pred_fallthru
        _
      %p115 = scmp.le.s32.totalorder 1, %s9
      %p116 = scmp.lt.s32.totalorder %s9, 3
      %p117 = pnand %p115, %p116
      %p118 = pneg %p117
      // Predicated region
      $region25: #{tpu_custom_call.1} parent=5 // pred_check
        _
      $region26: #{tpu_custom_call.1} parent=5 // pred_check_branch
        %120 = sbr.rel (%p117) target = $region28
      $region27: #{tpu_custom_call.1} parent=5 // pred_region
        %s121 = ssub.s32 %s9, 1
        %p122 = scmp.lt.s32.totalorder %s14, 1
        %s123 = scalar_select %p122, %s14, 1
        %s124 = smul.addr %s123, 8
        %s125 = scalar_lea.vmem %s0, %s124
        %p126 = pneg %p35
        %p127 = pneg %p32
        %p128 = scmp.lt.s32.totalorder %s14, 1
        %s129 = scalar_select %p128, %s14, 1
        %s130 = smul.addr %s129, 8
        %s131 = scalar_lea.vmem %s1, %s130
        %p132 = pneg %p61
        %p133 = pneg %p58
        %p134 = pneg %p82
        %p135 = pneg %p79
        %p136 = scmp.lt.s32.totalorder %s14, 1
        %s137 = scalar_select %p136, %s14, 1
        %s138 = smul.addr %s137, 8
        %s139 = scalar_lea.vmem %s0, %s138
        %p140 = scmp.lt.s32.totalorder %s14, 1
        %s141 = scalar_select %p140, %s14, 1
        %s142 = smul.addr %s141, 8
        %s143 = scalar_lea.vmem %s1, %s142
        %p144 = scmp.eq.s32.totalorder %s14, 0
        // Predicated region
        $region29: #{tpu_custom_call.1} parent=27 // pred_check
          %p145 = pneg %p144
        $region30: #{tpu_custom_call.1} parent=27 // pred_check_branch
          %147 = sbr.rel (%p145) target = $region32
        $region31: #{tpu_custom_call.1} parent=27 // pred_region
          %s148 = scalar_lea.smem [#allocation2], 0
          %149 = sst [smem:[%s148]] 0.0
        $region32: #{tpu_custom_call.1} parent=27 // pred_fallthru
          _
        %s150 = sld [smem:[#allocation2]]
        %v151 = vld [vmem:[%s139] sm:$0xff]
        %v152 = vld [vmem:[%s143] sm:$0xff]
        %v153 = vlaneseq
        %v154 = vand.u32 %v153, 127
        %155 = vset.pattern.permute.xlu0 0
        %156 = vperm.xlu0 %155, %v152
        %v157 = vpop.permute.xlu0 %156
        %vm158 = vcmp.eq.s32.totalorder %v154, %v157
        %v159 = vsel %vm158, %v151, 0.0
        %vm160 = vcmask 326656
        %v161 = vsel %vm160, %v159, 0.0
        %162 = vadd.xlane.f32.xlu0 %v161
        %v163 = vpop.xlane.xlu0 %162
        %v164 = vrot.slane %v163, 4
        %v165 = vadd.f32 %v163, %v164
        %v166 = vrot.slane %v165, 2
        %v167 = vadd.f32 %v165, %v166
        %v168 = vrot.slane %v167, 1
        %v169 = vadd.f32 %v167, %v168
        %s170 = vtos %v169
        %s171 = ssub.f32 0.0, %s170
        %s172 = smul.f32 %s171, 0.0625
        %s173 = sadd.f32 %s150, %s172
        %s174 = scalar_lea.smem [#allocation2], 0
        %175 = sst [smem:[%s174]] %s173
        %p176 = scmp.eq.s32.totalorder %s14, 1
        // Predicated region
        $region33: #{tpu_custom_call.1} parent=27 // pred_check
          %p177 = pneg %p176
        $region34: #{tpu_custom_call.1} parent=27 // pred_check_branch
          %179 = sbr.rel (%p177) target = $region36
        $region35: #{tpu_custom_call.1} parent=27 // pred_region
          %s180 = sld [smem:[#allocation2]]
          %s181 = scalar_lea.smem [#allocation3], 0
          %182 = sst [smem:[%s181]] %s180
        $region36: #{tpu_custom_call.1} parent=27 // pred_fallthru
          _
        // Predicated region
        $region37: #{tpu_custom_call.1} parent=27 // pred_check
          %p183 = pneg %p79
        $region38: #{tpu_custom_call.1} parent=27 // pred_check_branch
          %185 = sbr.rel (%p183) target = $region40
        $region39: #{tpu_custom_call.1} parent=27 // pred_region
          %s187 = ssub.s32 16, 16
          %188 = vsyncadd [#allocation4], %s187
          %191 = dma.smem_to_hbm [#allocation3], 16, %s2, [#allocation4]
        $region40: #{tpu_custom_call.1} parent=27 // pred_fallthru
          _
        // Predicated region
        $region41: #{tpu_custom_call.1} parent=27 // pred_check
          %p192 = pneg %p79
        $region42: #{tpu_custom_call.1} parent=27 // pred_check_branch
          %194 = sbr.rel (%p192) target = $region44
        $region43: #{tpu_custom_call.1} parent=27 // pred_region
          %195 = dma.done [#allocation4], 16
        $region44: #{tpu_custom_call.1} parent=27 // pred_fallthru
          _
        %196 = sfence
      $region28: #{tpu_custom_call.1} parent=5 // pred_fallthru
        _
      %p197 = scmp.le.s32.totalorder 2, %s9
      // Predicated region
      $region45: #{tpu_custom_call.1} parent=5 // pred_check
        %p198 = pneg %p197
      $region46: #{tpu_custom_call.1} parent=5 // pred_check_branch
        %200 = sbr.rel (%p198) target = $region48
      $region47: #{tpu_custom_call.1} parent=5 // pred_region
        %s201 = ssub.s32 %s9, 2
      $region48: #{tpu_custom_call.1} parent=5 // pred_fallthru
        _
    $region6: #{tpu_custom_call.1} parent=1 // loop_footer
      %s13 = sadd.s32 1, %s9
    $region7: #{tpu_custom_call.1} parent=1 // loop_footer_branch
      %8 = sbr.rel target = $region3
    $region8: #{tpu_custom_call.1} parent=1 // loop_exit
      _
    %202 = vsyncpa [#allocation4], 1
    %s203 = scalar_lea.sflag [#allocation4], 1
    %204 = vsyncpa %s203, 1

</llo_original>
